<compile_context>
chip_gen: v5e
topology: v5e:2x2
jax: 0.10.0
libtpu: 0.0.40
codegen_flags: <defaults>
</compile_context>

<pallas_src>
import functools
import math

import jax
import jax.numpy as jnp
from jax.experimental import pallas as pl
from jax.experimental.pallas import tpu as pltpu

_LANE = 128


def _round_up(a, b):
    return ((a + b - 1) // b) * b


# ----------------------------- Pallas kernel -------------------------------

def _spatial_attention_kernel(x_ref, o_ref, *, scale, n_real, n_kpad):
    """Fused (x @ x^T)/sqrt(F) -> softmax(last dim) for a block of BT slices.

    x_ref: (bt_block, n_kpad, F)       VMEM tile, native dtype
    o_ref: (bt_block, n_real, n_kpad)  VMEM tile
    """
    xk = x_ref[...]                                    # keys: all (padded) node rows
    if n_kpad != n_real:
        xq = x_ref[:, :n_real, :]                      # queries: real nodes only
    else:
        xq = xk

    # Fold 1/sqrt(F) into the LHS operand (N*F elems, not N*N); keep native
    # dtype so the MXU runs at its native bf16/f32 input rate, accumulate f32.
    xq = xq * jnp.asarray(scale, dtype=xq.dtype)
    score = jnp.einsum("bnf,bmf->bnm", xq, xk,
                       preferred_element_type=jnp.float32)   # (bt, Nq, Nk) f32

    if n_kpad != n_real:
        # Padded key columns (zero node rows of x) must not leak into softmax.
        col = jax.lax.broadcasted_iota(jnp.int32, (1, 1, n_kpad), 2)
        score = jnp.where(col < n_real, score, -1e30)

    # Numerically stable softmax over the key-node axis (all in f32).
    m = jnp.max(score, axis=-1, keepdims=True)
    p = jnp.exp(score - m)
    denom = jnp.sum(p, axis=-1, keepdims=True)
    # EUP approximate reciprocal + one Newton step on the (bt, Nq, 1) denom:
    # keeps the divide off the VALU critical path at near-full precision.
    r = pl.reciprocal(denom, approx=True)
    r = r * (2.0 - denom * r)
    out = p * r

    # TODO(synk): nn.Dropout(p=0.3) is stochastic / training-only; the
    # inference forward (identity) is implemented here.
    o_ref[...] = out.astype(o_ref.dtype)


# ------------------------------ JAX wrapper ---------------------------------

def spatial_attention(x):
    """Pallas equivalent of Spatial_Attention_Layer.forward (inference).

    :param x: (B, T, N, F) array (f32 or bf16)
    :return:  (B, T, N, N) attention scores, same dtype as x
    """
    B, T, N, F = x.shape
    BT = B * T
    scale = 1.0 / math.sqrt(F)

    # ----- lane-dense output layout --------------------------------------
    # Pad the key/node (lane) axis to a multiple of 128 when inflation is
    # modest; for tiny N (e.g. 16) padding would multiply HBM writeback, so
    # keep the exact shape there.
    if N % _LANE == 0:
        n_kpad = N
    else:
        cand = _round_up(N, _LANE)
        n_kpad = cand if cand <= 1.5 * N else N

    # ----- device-aware VMEM budget ---------------------------------------
    try:
        vmem_cap = pltpu.get_tpu_info().vmem_capacity_bytes
    except Exception:  # be conservative (v7x = 64 MiB) if the query fails
        vmem_cap = 64 * 1024 * 1024
    vmem_limit = min(vmem_cap * 3 // 4, 64 * 1024 * 1024)   # 48 MiB v7x / 64 MiB v5e,v6e
    vmem_budget = vmem_limit * 3 // 4

    # ----- per-BT-slice VMEM cost with lane/sublane padding ----------------
    itemsize = jnp.dtype(x.dtype).itemsize
    sub = {4: 8, 2: 16, 1: 32}.get(itemsize, 8)
    in_slice = _round_up(n_kpad, sub) * _round_up(F, _LANE) * itemsize
    out_slice = _round_up(N, sub) * _round_up(n_kpad, _LANE) * itemsize
    f32_interm = 3 * _round_up(N, 8) * _round_up(n_kpad, _LANE) * 4  # score/p/out
    bytes_per_bt = 2 * (in_slice + out_slice) + f32_interm          # dbl-buffered I/O

    bt_block = max(1, min(BT, vmem_budget // bytes_per_bt))
    if BT >= 2:  # guarantee >= 2 grid steps so "parallel" shards over 2 TCs (v7x)
        bt_block = min(bt_block, max(1, BT // 2))

    num_blocks = -(-BT // bt_block)          # cdiv
    bt_pad = num_blocks * bt_block

    # ----- wrapper-side padding (BT to block multiple, nodes to n_kpad) ----
    x2 = x.reshape(BT, N, F)
    if bt_pad != BT or n_kpad != N:
        x2 = jnp.pad(x2, ((0, bt_pad - BT), (0, n_kpad - N), (0, 0)))

    kernel = functools.partial(_spatial_attention_kernel,
                               scale=scale, n_real=N, n_kpad=n_kpad)

    out = pl.pallas_call(
        kernel,
        out_shape=jax.ShapeDtypeStruct((bt_pad, N, n_kpad), x.dtype),
        grid_spec=pltpu.PrefetchScalarGridSpec(
            num_scalar_prefetch=0,
            grid=(num_blocks,),
            in_specs=[pl.BlockSpec((bt_block, n_kpad, F), lambda i: (i, 0, 0))],
            out_specs=pl.BlockSpec((bt_block, N, n_kpad), lambda i: (i, 0, 0)),
        ),
        compiler_params=pltpu.CompilerParams(
            dimension_semantics=("parallel",),      # shard BT blocks over TCs
            vmem_limit_bytes=int(vmem_limit),
        ),
    )(x2)

    if bt_pad != BT or n_kpad != N:
        out = out[:BT, :, :N]
    return out.reshape(B, T, N, N)


# ----------------------------- reference check ------------------------------

def _reference_forward(x):
    B, T, N, F = x.shape
    x2 = x.reshape(-1, N, F).astype(jnp.float32)
    score = jnp.einsum("bnf,bmf->bnm", x2, x2) / math.sqrt(F)
    score = jax.nn.softmax(score, axis=-1)
    return score.reshape(B, T, N, N)


if __name__ == "__main__":
    key = jax.random.PRNGKey(0)
    k1, k2 = jax.random.split(key)

    # --- case 1: small N < 128 (exact / unpadded output path) --------------
    B, T, N, F = 2, 4, 16, 32
    x = jax.random.normal(k1, (B, T, N, F), dtype=jnp.float32)
    out = jax.block_until_ready(spatial_attention(x))
    ref = _reference_forward(x)
    assert out.shape == (B, T, N, N)
    assert jnp.allclose(jnp.sum(out, axis=-1), 1.0, atol=5e-4)
    assert jnp.allclose(out, ref, atol=5e-4, rtol=5e-4)

    # --- case 2: N not a multiple of 128 -> lane-dense padded-key path,
    #             BT not a multiple of the block -> BT padding path ---------
    B2, T2, N2, F2 = 1, 5, 200, 24
    xb2 = jax.random.normal(k2, (B2, T2, N2, F2), dtype=jnp.float32)
    out2 = jax.block_until_ready(spatial_attention(xb2))
    ref2 = _reference_forward(xb2)
    assert out2.shape == (B2, T2, N2, N2)
    assert jnp.allclose(jnp.sum(out2, axis=-1), 1.0, atol=5e-4)
    assert jnp.allclose(out2, ref2, atol=5e-4, rtol=5e-4)

    # --- case 3: bf16 input (native-dtype MXU path), softmax still f32 ------
    xbf = x.astype(jnp.bfloat16)
    out3 = jax.block_until_ready(spatial_attention(xbf))
    ref3 = _reference_forward(xbf.astype(jnp.float32))
    assert out3.dtype == jnp.bfloat16
    assert jnp.allclose(jnp.sum(out3.astype(jnp.float32), axis=-1), 1.0, atol=3e-2)
    assert jnp.allclose(out3.astype(jnp.float32), ref3, atol=3e-2, rtol=3e-2)

    print("KERNEL_OK")
</pallas_src>

<mosaic_0001>
module attributes {stable_mosaic.version = 11 : i64} {
  func.func @_spatial_attention_kernel(%arg0: i32, %arg1: memref<4x16x32xf32, #tpu.memory_space<vmem>>, %arg2: memref<4x16x16xf32, #tpu.memory_space<vmem>>) attributes {dimension_semantics = [#tpu.dimension_semantics<parallel>], iteration_bounds = array<i64: 2>, scalar_prefetch = 0 : i64, scratch_operands = 0 : i64, tpu.core_type = #tpu.core_type<tc>, window_params = [{transform_indices = @transform_0, window_bounds = array<i64: 4, 16, 32>}, {transform_indices = @transform_1, window_bounds = array<i64: 4, 16, 16>}]} {
    %c0 = arith.constant 0 : index
    %c0_0 = arith.constant 0 : index
    %c0_1 = arith.constant 0 : index
    %0 = vector.load %arg1[%c0, %c0_0, %c0_1] : memref<4x16x32xf32, #tpu.memory_space<vmem>>, vector<4x16x32xf32>
    %cst = arith.constant 0.176776692 : f32
    %1 = vector.broadcast %cst : f32 to vector<4x16x32xf32>
    %2 = arith.mulf %0, %1 : vector<4x16x32xf32>
    "tpu.trace_start"() <{level = 10 : i32, message = "bnf,bmf->bnm"}> : () -> ()
    %cst_2 = arith.constant dense<0.000000e+00> : vector<4x16x16xf32>
    %3 = tpu.matmul %2, %0, %cst_2 {dimension_numbers = #tpu.dot_dimension_numbers<[2], [2], [1], [1], [0, 0, 0, 1, 1, 1], [0], [0]>} : vector<4x16x32xf32>, vector<4x16x32xf32>, vector<4x16x16xf32> -> vector<4x16x16xf32>
    "tpu.trace_stop"() : () -> ()
    %cst_3 = arith.constant dense<0xFF800000> : vector<4x16xf32>
    %4 = vector.multi_reduction <maximumf>, %3, %cst_3 [2] : vector<4x16x16xf32> to vector<4x16xf32>
    %5 = vector.shape_cast %4 : vector<4x16xf32> to vector<4x16x1xf32>
    %6 = vector.broadcast %5 : vector<4x16x1xf32> to vector<4x16x16xf32>
    %7 = arith.subf %3, %6 : vector<4x16x16xf32>
    %8 = math.exp %7 : vector<4x16x16xf32>
    %cst_4 = arith.constant dense<0.000000e+00> : vector<4x16xf32>
    %9 = vector.multi_reduction <add>, %8, %cst_4 [2] : vector<4x16x16xf32> to vector<4x16xf32>
    %10 = vector.shape_cast %9 : vector<4x16xf32> to vector<4x16x1xf32>
    %11 = tpu.reciprocal %10 {approx = true} : vector<4x16x1xf32> -> vector<4x16x1xf32>
    %12 = arith.mulf %10, %11 : vector<4x16x1xf32>
    %cst_5 = arith.constant 2.000000e+00 : f32
    %13 = vector.broadcast %cst_5 : f32 to vector<4x16x1xf32>
    %14 = arith.subf %13, %12 : vector<4x16x1xf32>
    %15 = arith.mulf %11, %14 : vector<4x16x1xf32>
    %16 = vector.broadcast %15 : vector<4x16x1xf32> to vector<4x16x16xf32>
    %17 = arith.mulf %8, %16 : vector<4x16x16xf32>
    %c0_6 = arith.constant 0 : index
    %c0_7 = arith.constant 0 : index
    %c0_8 = arith.constant 0 : index
    %18 = vector.load %arg2[%c0_6, %c0_7, %c0_8] : memref<4x16x16xf32, #tpu.memory_space<vmem>>, vector<4x16x16xf32>
    tpu.vector_store %arg2[%c0_6, %c0_7, %c0_8], %17 {strides = array<i32>} : memref<4x16x16xf32, #tpu.memory_space<vmem>>, vector<4x16x16xf32>,
    return
  }
  func.func @transform_0(%arg0: i32) -> (i32, i32, i32) {
    %c0_i32 = arith.constant 0 : i32
    %c0_i32_0 = arith.constant 0 : i32
    %c0_i32_1 = arith.constant 0 : i32
    return %arg0, %c0_i32, %c0_i32_0 : i32, i32, i32
  }
  func.func @transform_1(%arg0: i32) -> (i32, i32, i32) {
    %c0_i32 = arith.constant 0 : i32
    %c0_i32_0 = arith.constant 0 : i32
    %c0_i32_1 = arith.constant 0 : i32
    return %arg0, %c0_i32, %c0_i32_0 : i32, i32, i32
  }
}

</mosaic_0001>

<llo_original>
// kernel: tpu_custom_call.1
$region0: #{tpu_custom_call.1}
  #allocation0 [shape = 'u32[]', space=smem, size = 0x4, offset = 0x4, fixed_abs, tag = 'smem constant byte address 0x4 - core index']
  #allocation1 [shape = 'u32[72,128]{1,0:T(1,128)}', space=vmem, size = 0x9000, scoped, tag = 'internal scratch']
  %s0 = inlined_call_operand.hbm [shape: f32[8,16,32], index: 0, kind: input, shape index: {}]
  %s1 = inlined_call_operand.hbm [shape: f32[8,16,16], index: 1, kind: output, shape index: {}]
  %s2 = sld [smem:[#allocation0]]
  $region41: #{tpu_custom_call.1} parent=0
    _
  %s4 = ssub.s32 1, %s2
  %s5 = scalar_select 0, %s4, %s2
  $region1: #{tpu_custom_call.1} parent=0
    #allocation2 [shape = 'u8[65536]{0}', space=vmem, size = 0x10000, scoped, tag = 'input window, operand 0']
    #allocation3 [shape = 's32[2]{0}', space=sflag, size = 0x8, scoped, tag = 'scoped memory for tpu_custom_call.1']
    #allocation4 [shape = 's32[2]{0}', space=sflag, size = 0x8, scoped, tag = 'scoped memory for tpu_custom_call.1']
    #allocation5 [shape = 'u8[65536]{0}', space=vmem, size = 0x10000, scoped, tag = 'output window, operand 0']
    %6 = vsyncpa [#allocation3], 0
    %s7 = scalar_lea.sflag [#allocation3], 1
    %8 = vsyncpa %s7, 0
    %9 = vsyncpa [#allocation4], 0
    %s10 = scalar_lea.sflag [#allocation4], 1
    %11 = vsyncpa %s10, 0
    loop: start=0, step=1, limit=4
    $region2: #{tpu_custom_call.1} parent=1 // loop_pre_header
      _
    $region3: #{tpu_custom_call.1} parent=1 // loop_header
      %s13 = sphi 0, %s17
      %p14 = scmp.ge.s32.totalorder %s13, 4
      %s23 = sphi 0, %s25
      %s26 = sphi 0, %s23
      %s27 = sphi 0, %s26
      %s43 = sphi 0, %s27
      %s49 = sphi 0, %s51
      %s52 = sphi 0, %s49
      %s53 = sphi 0, %s52
      %s69 = sphi 0, %s53
    $region4: #{tpu_custom_call.1} parent=1 // loop_header_branch
      %16 = sbr.rel (%p14) target = $region8
    $region5: #{tpu_custom_call.1} parent=1 // loop_body
      %s18 = ssub.s32 %s13, 1
      %s19 = ssub.s32 %s13, 2
      %s20 = sadd.s32 %s13, 1
      %s21 = ssub.s32 %s13, %s20
      %p22 = scmp.eq.s32.totalorder %s21, 0
      %s24 = sadd.s32 %s23, 1
      %s25 = scalar_select %p22, %s23, %s24
      %p28 = pneg %p22
      %p29 = scmp.eq.s32.totalorder %s13, 1
      %p30 = por %p28, %p29
      %p31 = scmp.ne.s32.totalorder %s23, %s26
      %p32 = scmp.eq.s32.totalorder %s13, 0
      %p33 = por %p31, %p32
      %p34 = scmp.ne.s32.totalorder %s23, %s26
      %p35 = scmp.eq.s32.totalorder %s18, 1
      %p36 = por %p34, %p35
      %p37 = scmp.ne.s32.totalorder %s26, %s27
      %p38 = scmp.eq.s32.totalorder %s18, 0
      %p39 = por %p37, %p38
      %p40 = scmp.ne.s32.totalorder %s26, %s27
      %p41 = scmp.eq.s32.totalorder %s19, 1
      %p42 = por %p40, %p41
      %p44 = scmp.ne.s32.totalorder %s27, %s43
      %p45 = scmp.eq.s32.totalorder %s19, 0
      %p46 = por %p44, %p45
      %s47 = ssub.s32 %s13, %s20
      %p48 = scmp.eq.s32.totalorder %s47, 0
      %s50 = sadd.s32 %s49, 1
      %s51 = scalar_select %p48, %s49, %s50
      %p54 = pneg %p48
      %p55 = scmp.eq.s32.totalorder %s13, 1
      %p56 = por %p54, %p55
      %p57 = scmp.ne.s32.totalorder %s49, %s52
      %p58 = scmp.eq.s32.totalorder %s13, 0
      %p59 = por %p57, %p58
      %p60 = scmp.ne.s32.totalorder %s49, %s52
      %p61 = scmp.eq.s32.totalorder %s18, 1
      %p62 = por %p60, %p61
      %p63 = scmp.ne.s32.totalorder %s52, %s53
      %p64 = scmp.eq.s32.totalorder %s18, 0
      %p65 = por %p63, %p64
      %p66 = scmp.ne.s32.totalorder %s52, %s53
      %p67 = scmp.eq.s32.totalorder %s19, 1
      %p68 = por %p66, %p67
      %p70 = scmp.ne.s32.totalorder %s53, %s69
      %p71 = scmp.eq.s32.totalorder %s19, 0
      %p72 = por %p70, %p71
      %p73 = scmp.le.s32.totalorder 1, %s13
      %p74 = scmp.lt.s32.totalorder %s13, 3
      %p75 = pnand %p73, %p74
      %p76 = pneg %p75
      // Predicated region
      $region9: #{tpu_custom_call.1} parent=5 // pred_check
        _
      $region10: #{tpu_custom_call.1} parent=5 // pred_check_branch
        %78 = sbr.rel (%p75) target = $region12
      $region11: #{tpu_custom_call.1} parent=5 // pred_region
        %s79 = ssub.s32 %s13, 1
      $region12: #{tpu_custom_call.1} parent=5 // pred_fallthru
        _
      %p80 = scmp.lt.s32.totalorder %s13, 2
      // Predicated region
      $region13: #{tpu_custom_call.1} parent=5 // pred_check
        %p81 = pneg %p80
      $region14: #{tpu_custom_call.1} parent=5 // pred_check_branch
        %83 = sbr.rel (%p81) target = $region16
      $region15: #{tpu_custom_call.1} parent=5 // pred_region
        // Predicated region
        $region17: #{tpu_custom_call.1} parent=15 // pred_check
          %p84 = pneg %p33
        $region18: #{tpu_custom_call.1} parent=15 // pred_check_branch
          %86 = sbr.rel (%p84) target = $region20
        $region19: #{tpu_custom_call.1} parent=15 // pred_region
          %s87 = sand.u32 %s23, 1
          %s88 = scalar_lea.sflag [#allocation3], %s87
          %s89 = sand.u32 %s23, 1
          %s90 = smul.addr %s89, 64
          %s91 = scalar_lea.vmem [#allocation2], %s90
          %s92 = smul.u32 4, %s13
          %94 = vsyncadd %s88, 0
          %s95 = smul.addr %s92, 2
          %s96 = smul.addr %s95, 8
          %s97 = scalar_lea.hbm %s0, %s96
          %s98 = sshll.u32 %s97, 4
          %s99 = int_to_ptr.hbm [resolvable:$true] %s98
          %s100 = sshll.u32 %s91, 4
          %s101 = int_to_ptr.vmem [resolvable:$true] %s100
          %106 = dma.hbm_to_vmem [thread:$0]  %s99, 1024, %s101, %s88, 128, 128, 8
        $region20: #{tpu_custom_call.1} parent=15 // pred_fallthru
          _
      $region16: #{tpu_custom_call.1} parent=5 // pred_fallthru
        _
      %p107 = scmp.le.s32.totalorder 1, %s13
      %p108 = scmp.lt.s32.totalorder %s13, 3
      %p109 = pnand %p107, %p108
      %p110 = pneg %p109
      // Predicated region
      $region21: #{tpu_custom_call.1} parent=5 // pred_check
        _
      $region22: #{tpu_custom_call.1} parent=5 // pred_check_branch
        %112 = sbr.rel (%p109) target = $region24
      $region23: #{tpu_custom_call.1} parent=5 // pred_region
        %s113 = ssub.s32 %s13, 1
        %s114 = sand.u32 %s26, 1
        %s115 = scalar_lea.sflag [#allocation3], %s114
        %s116 = sand.u32 %s26, 1
        %s117 = smul.addr %s116, 64
        %s118 = scalar_lea.vmem [#allocation2], %s117
        // Predicated region
        $region25: #{tpu_custom_call.1} parent=23 // pred_check
          %p119 = pneg %p39
        $region26: #{tpu_custom_call.1} parent=23 // pred_check_branch
          %121 = sbr.rel (%p119) target = $region28
        $region27: #{tpu_custom_call.1} parent=23 // pred_region
          %123 = dma.done %s115, 1024
        $region28: #{tpu_custom_call.1} parent=23 // pred_fallthru
          _
        %s124 = sand.u32 %s26, 1
        %s125 = scalar_lea.sflag [#allocation3], %s124
        %s126 = sand.u32 %s26, 1
        %s127 = smul.addr %s126, 64
        %s128 = scalar_lea.vmem [#allocation2], %s127
        %p129 = pneg %p39
        %p130 = pneg %p36
        %p131 = pneg %p65
        %p132 = pneg %p62
        %s133 = sand.u32 %s52, 1
        %s134 = scalar_lea.sflag [#allocation4], %s133
        %s135 = sand.u32 %s52, 1
        %s136 = smul.addr %s135, 64
        %s137 = scalar_lea.vmem [#allocation5], %s136
        %s138 = smul.u32 4, %s18
        %s139 = smul.u32 4, %s18
        %v140 = vld [vmem:[%s118] sm:$0xff]
        %v141 = vld [vmem:[%s118 + $0x8] sm:$0xff]
        %v142 = vld [vmem:[%s118 + $0x10] sm:$0xff]
        %v143 = vld [vmem:[%s118 + $0x18] sm:$0xff]
        %v144 = vld [vmem:[%s118 + $0x20] sm:$0xff]
        %v145 = vld [vmem:[%s118 + $0x28] sm:$0xff]
        %v146 = vld [vmem:[%s118 + $0x30] sm:$0xff]
        %v147 = vld [vmem:[%s118 + $0x38] sm:$0xff]
        %v148 = vmul.f32 %v140, 0.17677669
        %v149 = vmul.f32 %v141, 0.17677669
        %v150 = vmul.f32 %v142, 0.17677669
        %v151 = vmul.f32 %v143, 0.17677669
        %v152 = vmul.f32 %v144, 0.17677669
        %v153 = vmul.f32 %v145, 0.17677669
        %v154 = vmul.f32 %v146, 0.17677669
        %v155 = vmul.f32 %v147, 0.17677669
        %vm156 = vcmask 261120
        %v158 = vsel %vm156, %v148, 0
        %v161 = vsel %vm156, %v149, 0
        %v164 = vsel %vm156, %v140, 0
        %v167 = vsel %vm156, %v141, 0
        %169 = vmatpush.xpose.msra.mxu0 0.0
        %170 = vmatpush.xpose.msra.mxu0 0.0
        %171 = vmatpush.xpose.msra.mxu0 0.0
        %172 = vmatpush.xpose.msra.mxu0 0.0
        %173 = vmatpush.xpose.msra.mxu0 0.0
        %174 = vmatpush.xpose.msra.mxu0 0.0
        %175 = vmatpush.xpose.msra.mxu0 0.0
        %176 = vmatpush.xpose.msra.mxu0 0.0
        %177 = vmatpush.xpose.msra.mxu0 0.0
        %178 = vmatpush.xpose.msra.mxu0 0.0
        %179 = vmatpush.xpose.msra.mxu0 0.0
        %180 = vmatpush.xpose.msra.mxu0 0.0
        %181 = vmatpush.xpose.msra.mxu0 0.0
        %182 = vmatpush.xpose.msra.mxu0 0.0
        %183 = vmatpush.xpose.msra.mxu0 %v167
        %184 = vmatpush.xpose.msra.mxu0 %v164
        %185 = vmatmul.f32.gmra.mxu0 %v158
        %v186 = vpop.f32.mrf.mxu0
        %v187 = vadd.f32 0.0, %v186
        %188 = vmatmul.f32.gmra.mxu0 %v161
        %v189 = vpop.f32.mrf.mxu0
        %v190 = vadd.f32 0.0, %v189
        %191 = vdwg.mxu0
        %v193 = vsel %vm156, %v150, 0
        %v196 = vsel %vm156, %v151, 0
        %v199 = vsel %vm156, %v142, 0
        %v202 = vsel %vm156, %v143, 0
        %204 = vmatpush.xpose.msra.mxu0 0.0
        %205 = vmatpush.xpose.msra.mxu0 0.0
        %206 = vmatpush.xpose.msra.mxu0 0.0
        %207 = vmatpush.xpose.msra.mxu0 0.0
        %208 = vmatpush.xpose.msra.mxu0 0.0
        %209 = vmatpush.xpose.msra.mxu0 0.0
        %210 = vmatpush.xpose.msra.mxu0 0.0
        %211 = vmatpush.xpose.msra.mxu0 0.0
        %212 = vmatpush.xpose.msra.mxu0 0.0
        %213 = vmatpush.xpose.msra.mxu0 0.0
        %214 = vmatpush.xpose.msra.mxu0 0.0
        %215 = vmatpush.xpose.msra.mxu0 0.0
        %216 = vmatpush.xpose.msra.mxu0 0.0
        %217 = vmatpush.xpose.msra.mxu0 0.0
        %218 = vmatpush.xpose.msra.mxu0 %v202
        %219 = vmatpush.xpose.msra.mxu0 %v199
        %220 = vmatmul.f32.gmra.mxu0 %v193
        %v221 = vpop.f32.mrf.mxu0
        %v222 = vadd.f32 0.0, %v221
        %223 = vmatmul.f32.gmra.mxu0 %v196
        %v224 = vpop.f32.mrf.mxu0
        %v225 = vadd.f32 0.0, %v224
        %226 = vdwg.mxu0
        %v228 = vsel %vm156, %v152, 0
        %v231 = vsel %vm156, %v153, 0
        %v234 = vsel %vm156, %v144, 0
        %v237 = vsel %vm156, %v145, 0
        %239 = vmatpush.xpose.msra.mxu0 0.0
        %240 = vmatpush.xpose.msra.mxu0 0.0
        %241 = vmatpush.xpose.msra.mxu0 0.0
        %242 = vmatpush.xpose.msra.mxu0 0.0
        %243 = vmatpush.xpose.msra.mxu0 0.0
        %244 = vmatpush.xpose.msra.mxu0 0.0
        %245 = vmatpush.xpose.msra.mxu0 0.0
        %246 = vmatpush.xpose.msra.mxu0 0.0
        %247 = vmatpush.xpose.msra.mxu0 0.0
        %248 = vmatpush.xpose.msra.mxu0 0.0
        %249 = vmatpush.xpose.msra.mxu0 0.0
        %250 = vmatpush.xpose.msra.mxu0 0.0
        %251 = vmatpush.xpose.msra.mxu0 0.0
        %252 = vmatpush.xpose.msra.mxu0 0.0
        %253 = vmatpush.xpose.msra.mxu0 %v237
        %254 = vmatpush.xpose.msra.mxu0 %v234
        %255 = vmatmul.f32.gmra.mxu0 %v228
        %v256 = vpop.f32.mrf.mxu0
        %v257 = vadd.f32 0.0, %v256
        %258 = vmatmul.f32.gmra.mxu0 %v231
        %v259 = vpop.f32.mrf.mxu0
        %v260 = vadd.f32 0.0, %v259
        %261 = vdwg.mxu0
        %v263 = vsel %vm156, %v154, 0
        %v266 = vsel %vm156, %v155, 0
        %v269 = vsel %vm156, %v146, 0
        %v272 = vsel %vm156, %v147, 0
        %274 = vmatpush.xpose.msra.mxu0 0.0
        %275 = vmatpush.xpose.msra.mxu0 0.0
        %276 = vmatpush.xpose.msra.mxu0 0.0
        %277 = vmatpush.xpose.msra.mxu0 0.0
        %278 = vmatpush.xpose.msra.mxu0 0.0
        %279 = vmatpush.xpose.msra.mxu0 0.0
        %280 = vmatpush.xpose.msra.mxu0 0.0
        %281 = vmatpush.xpose.msra.mxu0 0.0
        %282 = vmatpush.xpose.msra.mxu0 0.0
        %283 = vmatpush.xpose.msra.mxu0 0.0
        %284 = vmatpush.xpose.msra.mxu0 0.0
        %285 = vmatpush.xpose.msra.mxu0 0.0
        %286 = vmatpush.xpose.msra.mxu0 0.0
        %287 = vmatpush.xpose.msra.mxu0 0.0
        %288 = vmatpush.xpose.msra.mxu0 %v272
        %289 = vmatpush.xpose.msra.mxu0 %v269
        %290 = vmatmul.f32.gmra.mxu0 %v263
        %v291 = vpop.f32.mrf.mxu0
        %v292 = vadd.f32 0.0, %v291
        %293 = vmatmul.f32.gmra.mxu0 %v266
        %v294 = vpop.f32.mrf.mxu0
        %v295 = vadd.f32 0.0, %v294
        %296 = vdwg.mxu0
        %vm297 = vcmask 130048
        %v298 = vsel %vm297, %v187, -inf
        %299 = vmax.xlane.f32.xlu0 %v298
        %v300 = vpop.xlane.xlu0 %299
        %v301 = vsel %vm297, %v190, -inf
        %302 = vmax.xlane.f32.xlu0 %v301
        %v303 = vpop.xlane.xlu0 %302
        %v304 = vsel %vm297, %v222, -inf
        %305 = vmax.xlane.f32.xlu0 %v304
        %v306 = vpop.xlane.xlu0 %305
        %v307 = vsel %vm297, %v225, -inf
        %308 = vmax.xlane.f32.xlu0 %v307
        %v309 = vpop.xlane.xlu0 %308
        %v310 = vsel %vm297, %v257, -inf
        %311 = vmax.xlane.f32.xlu0 %v310
        %v312 = vpop.xlane.xlu0 %311
        %v313 = vsel %vm297, %v260, -inf
        %314 = vmax.xlane.f32.xlu0 %v313
        %v315 = vpop.xlane.xlu0 %314
        %v316 = vsel %vm297, %v292, -inf
        %317 = vmax.xlane.f32.xlu0 %v316
        %v318 = vpop.xlane.xlu0 %317
        %v319 = vsel %vm297, %v295, -inf
        %320 = vmax.xlane.f32.xlu0 %v319
        %v321 = vpop.xlane.xlu0 %320
        %v322 = vsub.f32 %v187, %v300
        %v323 = vsub.f32 %v190, %v303
        %v324 = vsub.f32 %v222, %v306
        %v325 = vsub.f32 %v225, %v309
        %v326 = vsub.f32 %v257, %v312
        %v327 = vsub.f32 %v260, %v315
        %v328 = vsub.f32 %v292, %v318
        %v329 = vsub.f32 %v295, %v321
        %v330 = vmul.f32 %v322, 1.442695
        %v331 = vpow.pop %v330
        %v332 = vmul.f32 %v323, 1.442695
        %v333 = vpow.pop %v332
        %v334 = vmul.f32 %v324, 1.442695
        %v335 = vpow.pop %v334
        %v336 = vmul.f32 %v325, 1.442695
        %v337 = vpow.pop %v336
        %v338 = vmul.f32 %v326, 1.442695
        %v339 = vpow.pop %v338
        %v340 = vmul.f32 %v327, 1.442695
        %v341 = vpow.pop %v340
        %v342 = vmul.f32 %v328, 1.442695
        %v343 = vpow.pop %v342
        %v344 = vmul.f32 %v329, 1.442695
        %v345 = vpow.pop %v344
        %v346 = vsel %vm297, %v331, 0.0
        %347 = vadd.xlane.f32.xlu0 %v346
        %v348 = vpop.xlane.xlu0 %347
        %v349 = vsel %vm297, %v333, 0.0
        %350 = vadd.xlane.f32.xlu0 %v349
        %v351 = vpop.xlane.xlu0 %350
        %v352 = vsel %vm297, %v335, 0.0
        %353 = vadd.xlane.f32.xlu0 %v352
        %v354 = vpop.xlane.xlu0 %353
        %v355 = vsel %vm297, %v337, 0.0
        %356 = vadd.xlane.f32.xlu0 %v355
        %v357 = vpop.xlane.xlu0 %356
        %v358 = vsel %vm297, %v339, 0.0
        %359 = vadd.xlane.f32.xlu0 %v358
        %v360 = vpop.xlane.xlu0 %359
        %v361 = vsel %vm297, %v341, 0.0
        %362 = vadd.xlane.f32.xlu0 %v361
        %v363 = vpop.xlane.xlu0 %362
        %v364 = vsel %vm297, %v343, 0.0
        %365 = vadd.xlane.f32.xlu0 %v364
        %v366 = vpop.xlane.xlu0 %365
        %v367 = vsel %vm297, %v345, 0.0
        %368 = vadd.xlane.f32.xlu0 %v367
        %v369 = vpop.xlane.xlu0 %368
        %v370 = vrcp.pop %v348
        %v371 = vrcp.pop %v351
        %v372 = vrcp.pop %v354
        %v373 = vrcp.pop %v357
        %v374 = vrcp.pop %v360
        %v375 = vrcp.pop %v363
        %v376 = vrcp.pop %v366
        %v377 = vrcp.pop %v369
        %v378 = vmul.f32 %v348, %v370
        %v379 = vmul.f32 %v351, %v371
        %v380 = vmul.f32 %v354, %v372
        %v381 = vmul.f32 %v357, %v373
        %v382 = vmul.f32 %v360, %v374
        %v383 = vmul.f32 %v363, %v375
        %v384 = vmul.f32 %v366, %v376
        %v385 = vmul.f32 %v369, %v377
        %v386 = vsub.f32 2.0, %v378
        %v387 = vsub.f32 2.0, %v379
        %v388 = vsub.f32 2.0, %v380
        %v389 = vsub.f32 2.0, %v381
        %v390 = vsub.f32 2.0, %v382
        %v391 = vsub.f32 2.0, %v383
        %v392 = vsub.f32 2.0, %v384
        %v393 = vsub.f32 2.0, %v385
        %v394 = vmul.f32 %v370, %v386
        %v395 = vmul.f32 %v371, %v387
        %v396 = vmul.f32 %v372, %v388
        %v397 = vmul.f32 %v373, %v389
        %v398 = vmul.f32 %v374, %v390
        %v399 = vmul.f32 %v375, %v391
        %v400 = vmul.f32 %v376, %v392
        %v401 = vmul.f32 %v377, %v393
        %v402 = vmul.f32 %v331, %v394
        %v403 = vmul.f32 %v333, %v395
        %v404 = vmul.f32 %v335, %v396
        %v405 = vmul.f32 %v337, %v397
        %v406 = vmul.f32 %v339, %v398
        %v407 = vmul.f32 %v341, %v399
        %v408 = vmul.f32 %v343, %v400
        %v409 = vmul.f32 %v345, %v401
        %410 = vst.msk [vmem:[%s137] sm:$0xff] %vm297, %v402
        %411 = vst.msk [vmem:[%s137 + $0x8] sm:$0xff] %vm297, %v403
        %412 = vst.msk [vmem:[%s137 + $0x10] sm:$0xff] %vm297, %v404
        %413 = vst.msk [vmem:[%s137 + $0x18] sm:$0xff] %vm297, %v405
        %414 = vst.msk [vmem:[%s137 + $0x20] sm:$0xff] %vm297, %v406
        %415 = vst.msk [vmem:[%s137 + $0x28] sm:$0xff] %vm297, %v407
        %416 = vst.msk [vmem:[%s137 + $0x30] sm:$0xff] %vm297, %v408
        %417 = vst.msk [vmem:[%s137 + $0x38] sm:$0xff] %vm297, %v409
        %s418 = sand.u32 %s52, 1
        %s419 = scalar_lea.sflag [#allocation4], %s418
        %s420 = sand.u32 %s52, 1
        %s421 = smul.addr %s420, 64
        %s422 = scalar_lea.vmem [#allocation5], %s421
        // Predicated region
        $region29: #{tpu_custom_call.1} parent=23 // pred_check
          %p423 = pneg %p62
        $region30: #{tpu_custom_call.1} parent=23 // pred_check_branch
          %425 = sbr.rel (%p423) target = $region32
        $region31: #{tpu_custom_call.1} parent=23 // pred_region
          %s426 = smul.u32 4, %s18
          %428 = vsyncadd %s419, 0
          %s429 = smul.addr %s426, 2
          %s430 = smul.addr %s429, 8
          %s431 = scalar_lea.hbm %s1, %s430
          %s432 = sshll.u32 %s422, 4
          %s433 = int_to_ptr.vmem [resolvable:$true] %s432
          %s434 = sshll.u32 %s431, 4
          %s435 = int_to_ptr.hbm [resolvable:$true] %s434
          %440 = dma.vmem_to_hbm [thread:$0]  %s433, 1024, %s435, %s419, 128, 128, 8
        $region32: #{tpu_custom_call.1} parent=23 // pred_fallthru
          _
      $region24: #{tpu_custom_call.1} parent=5 // pred_fallthru
        _
      %p441 = scmp.le.s32.totalorder 2, %s13
      // Predicated region
      $region33: #{tpu_custom_call.1} parent=5 // pred_check
        %p442 = pneg %p441
      $region34: #{tpu_custom_call.1} parent=5 // pred_check_branch
        %444 = sbr.rel (%p442) target = $region36
      $region35: #{tpu_custom_call.1} parent=5 // pred_region
        %s445 = ssub.s32 %s13, 2
        // Predicated region
        $region37: #{tpu_custom_call.1} parent=35 // pred_check
          %p446 = pneg %p68
        $region38: #{tpu_custom_call.1} parent=35 // pred_check_branch
          %448 = sbr.rel (%p446) target = $region40
        $region39: #{tpu_custom_call.1} parent=35 // pred_region
          %s449 = sand.u32 %s53, 1
          %s450 = scalar_lea.sflag [#allocation4], %s449
          %s451 = sand.u32 %s53, 1
          %s452 = smul.addr %s451, 64
          %s453 = scalar_lea.vmem [#allocation5], %s452
          %455 = dma.done %s450, 1024
        $region40: #{tpu_custom_call.1} parent=35 // pred_fallthru
          _
      $region36: #{tpu_custom_call.1} parent=5 // pred_fallthru
        _
    $region6: #{tpu_custom_call.1} parent=1 // loop_footer
      %s17 = sadd.s32 1, %s13
    $region7: #{tpu_custom_call.1} parent=1 // loop_footer_branch
      %12 = sbr.rel target = $region3
    $region8: #{tpu_custom_call.1} parent=1 // loop_exit
      _
    %456 = vsyncpa [#allocation3], 1
    %s457 = scalar_lea.sflag [#allocation3], 1
    %458 = vsyncpa %s457, 1
    %459 = vsyncpa [#allocation4], 1
    %s460 = scalar_lea.sflag [#allocation4], 1
    %461 = vsyncpa %s460, 1

</llo_original>
